<compile_context>
chip_gen: v6e
topology: v6e:2x2x1
jax: 0.10.0
libtpu: 0.0.40
codegen_flags: <defaults>
</compile_context>

<pallas_src>
import jax
import jax.numpy as jnp
from jax.experimental import pallas as pl
from jax.experimental.pallas import tpu as pltpu


def critic_kernel(s_ref, a_ref, w1s_ref, w1a_ref, b1_ref,
                  w2_ref, b2_ref, w3_ref, b3_ref, o_ref):
    s = s_ref[...]          # [TB, inp]
    a = a_ref[...]          # [TB, 1]

    # layer 1: MXU matmul over the state features + VPU rank-1 term for the
    # action column + bias, then ReLU.
    h1 = jnp.dot(s, w1s_ref[...], preferred_element_type=jnp.float32)
    h1 = h1 + a * w1a_ref[...] + b1_ref[...]
    h1 = jnp.maximum(h1, 0.0)

    # layer 2: Linear + ReLU
    h2 = jnp.dot(h1, w2_ref[...], preferred_element_type=jnp.float32) + b2_ref[...]
    h2 = jnp.maximum(h2, 0.0)

    # layer 3: Linear (no activation) -> [TB, 1]
    o_ref[...] = jnp.dot(h2, w3_ref[...], preferred_element_type=jnp.float32) + b3_ref[...]


def critic_forward(state, action, params, *, tile_b=512):
    """state: [B, inp_size], action: [B, 1]  ->  value: [B, 1]"""
    w1, b1, w2, b2, w3, b3 = params            # w1: [inp_size + 1, H]
    B, inp_size = state.shape
    H = w1.shape[1]

    # Split the first-layer weight once (tiny, weight-sized op — not per-row).
    w1_state = w1[:inp_size]                   # [inp_size, H]
    w1_action = w1[inp_size:]                  # [1, H]

    tb = min(tile_b, B)
    grid = (pl.cdiv(B, tb),)

    batch_spec = lambda shape: pl.BlockSpec(shape, lambda i: (i, 0))
    resident = lambda shape: pl.BlockSpec(shape, lambda i: (0, 0))

    flops = 2 * B * (inp_size * H + H + H * H + H)
    bytes_accessed = 4 * (B * (inp_size + 1 + 1)
                          + (inp_size + 1) * H + H + H * H + H + H + 1)
    cost = pl.CostEstimate(flops=flops, transcendentals=0,
                           bytes_accessed=bytes_accessed)

    return pl.pallas_call(
        critic_kernel,
        out_shape=jax.ShapeDtypeStruct((B, 1), jnp.float32),
        grid=grid,
        in_specs=[
            batch_spec((tb, inp_size)),        # state  (tiled over batch)
            batch_spec((tb, 1)),               # action (tiled over batch)
            resident((inp_size, H)),           # w1[:inp]
            resident((1, H)),                  # w1[inp:]  (action column)
            resident((1, H)),                  # b1
            resident((H, H)),                  # w2
            resident((1, H)),                  # b2
            resident((H, 1)),                  # w3
            resident((1, 1)),                  # b3
        ],
        out_specs=batch_spec((tb, 1)),
        compiler_params=pltpu.CompilerParams(
            dimension_semantics=("parallel",)),
        cost_estimate=cost,
    )(state, action, w1_state, w1_action, b1, w2, b2, w3, b3)


def init_params(key, inp_size, hidden_size):
    """Deterministic parameter init matching nn.Linear shapes (stored as [in, out])."""
    k = jax.random.split(key, 6)
    d_in = inp_size + 1

    def uinit(kk, shape, fan_in):
        bound = 1.0 / jnp.sqrt(fan_in)
        return jax.random.uniform(kk, shape, jnp.float32, -bound, bound)

    w1 = uinit(k[0], (d_in, hidden_size), d_in)
    b1 = uinit(k[1], (1, hidden_size), d_in)
    w2 = uinit(k[2], (hidden_size, hidden_size), hidden_size)
    b2 = uinit(k[3], (1, hidden_size), hidden_size)
    w3 = uinit(k[4], (hidden_size, 1), hidden_size)
    b3 = uinit(k[5], (1, 1), hidden_size)
    return (w1, b1, w2, b2, w3, b3)


if __name__ == "__main__":
    inp_size = 16
    hidden_size = 32
    batch = 8

    key = jax.random.PRNGKey(0)
    kp, ks, ka = jax.random.split(key, 3)

    params = init_params(kp, inp_size, hidden_size)
    state = jax.random.normal(ks, (batch, inp_size), jnp.float32)
    action = jax.random.normal(ka, (batch, 1), jnp.float32)

    out = critic_forward(state, action, params)
    out = jax.block_until_ready(out)

    # Pure-JAX reference (matches the PyTorch forward exactly).
    w1, b1, w2, b2, w3, b3 = params
    x = jnp.concatenate([state, action], axis=1)
    h1 = jnp.maximum(x @ w1 + b1, 0.0)
    h2 = jnp.maximum(h1 @ w2 + b2, 0.0)
    ref = h2 @ w3 + b3
    assert out.shape == (batch, 1)
    assert jnp.allclose(out, ref, atol=1e-5, rtol=1e-5)

    print("KERNEL_OK")
</pallas_src>

<mosaic_0001>
module attributes {stable_mosaic.version = 11 : i64} {
  func.func @critic_kernel(%arg0: i32, %arg1: memref<8x16xf32, #tpu.memory_space<vmem>>, %arg2: memref<8x1xf32, #tpu.memory_space<vmem>>, %arg3: memref<16x32xf32, #tpu.memory_space<vmem>>, %arg4: memref<1x32xf32, #tpu.memory_space<vmem>>, %arg5: memref<1x32xf32, #tpu.memory_space<vmem>>, %arg6: memref<32x32xf32, #tpu.memory_space<vmem>>, %arg7: memref<1x32xf32, #tpu.memory_space<vmem>>, %arg8: memref<32x1xf32, #tpu.memory_space<vmem>>, %arg9: memref<1x1xf32, #tpu.memory_space<vmem>>, %arg10: memref<8x1xf32, #tpu.memory_space<vmem>>) attributes {dimension_semantics = [#tpu.dimension_semantics<parallel>], iteration_bounds = array<i64: 1>, scalar_prefetch = 0 : i64, scratch_operands = 0 : i64, tpu.core_type = #tpu.core_type<tc>, window_params = [{transform_indices = @transform_0, window_bounds = array<i64: 8, 16>}, {transform_indices = @transform_1, window_bounds = array<i64: 8, 1>}, {pipeline_mode = #tpu.pipeline_mode<synchronous>, transform_indices = @transform_2, window_bounds = array<i64: 16, 32>}, {pipeline_mode = #tpu.pipeline_mode<synchronous>, transform_indices = @transform_3, window_bounds = array<i64: 1, 32>}, {pipeline_mode = #tpu.pipeline_mode<synchronous>, transform_indices = @transform_4, window_bounds = array<i64: 1, 32>}, {pipeline_mode = #tpu.pipeline_mode<synchronous>, transform_indices = @transform_5, window_bounds = array<i64: 32, 32>}, {pipeline_mode = #tpu.pipeline_mode<synchronous>, transform_indices = @transform_6, window_bounds = array<i64: 1, 32>}, {pipeline_mode = #tpu.pipeline_mode<synchronous>, transform_indices = @transform_7, window_bounds = array<i64: 32, 1>}, {pipeline_mode = #tpu.pipeline_mode<synchronous>, transform_indices = @transform_8, window_bounds = array<i64: 1, 1>}, {transform_indices = @transform_9, window_bounds = array<i64: 8, 1>}]} {
    %c0 = arith.constant 0 : index
    %c0_0 = arith.constant 0 : index
    %0 = vector.load %arg1[%c0, %c0_0] : memref<8x16xf32, #tpu.memory_space<vmem>>, vector<8x16xf32>
    %c0_1 = arith.constant 0 : index
    %c0_2 = arith.constant 0 : index
    %1 = vector.load %arg2[%c0_1, %c0_2] : memref<8x1xf32, #tpu.memory_space<vmem>>, vector<8x1xf32>
    %c0_3 = arith.constant 0 : index
    %c0_4 = arith.constant 0 : index
    %2 = vector.load %arg3[%c0_3, %c0_4] : memref<16x32xf32, #tpu.memory_space<vmem>>, vector<16x32xf32>
    %cst = arith.constant dense<0.000000e+00> : vector<8x32xf32>
    %3 = tpu.matmul %0, %2, %cst {dimension_numbers = #tpu.dot_dimension_numbers<[1], [0], [0], [1], [0, 0, 1, 1], [], []>} : vector<8x16xf32>, vector<16x32xf32>, vector<8x32xf32> -> vector<8x32xf32>
    %c0_5 = arith.constant 0 : index
    %c0_6 = arith.constant 0 : index
    %4 = vector.load %arg4[%c0_5, %c0_6] : memref<1x32xf32, #tpu.memory_space<vmem>>, vector<1x32xf32>
    %5 = vector.broadcast %1 : vector<8x1xf32> to vector<8x32xf32>
    %6 = vector.broadcast %4 : vector<1x32xf32> to vector<8x32xf32>
    %7 = arith.mulf %5, %6 : vector<8x32xf32>
    %8 = arith.addf %3, %7 : vector<8x32xf32>
    %c0_7 = arith.constant 0 : index
    %c0_8 = arith.constant 0 : index
    %9 = vector.load %arg5[%c0_7, %c0_8] : memref<1x32xf32, #tpu.memory_space<vmem>>, vector<1x32xf32>
    %10 = vector.broadcast %9 : vector<1x32xf32> to vector<8x32xf32>
    %11 = arith.addf %8, %10 : vector<8x32xf32>
    %cst_9 = arith.constant 0.000000e+00 : f32
    %12 = vector.broadcast %cst_9 : f32 to vector<8x32xf32>
    %13 = arith.maximumf %11, %12 : vector<8x32xf32>
    %c0_10 = arith.constant 0 : index
    %c0_11 = arith.constant 0 : index
    %14 = vector.load %arg6[%c0_10, %c0_11] : memref<32x32xf32, #tpu.memory_space<vmem>>, vector<32x32xf32>
    %cst_12 = arith.constant dense<0.000000e+00> : vector<8x32xf32>
    %15 = tpu.matmul %13, %14, %cst_12 {dimension_numbers = #tpu.dot_dimension_numbers<[1], [0], [0], [1], [0, 0, 1, 1], [], []>} : vector<8x32xf32>, vector<32x32xf32>, vector<8x32xf32> -> vector<8x32xf32>
    %c0_13 = arith.constant 0 : index
    %c0_14 = arith.constant 0 : index
    %16 = vector.load %arg7[%c0_13, %c0_14] : memref<1x32xf32, #tpu.memory_space<vmem>>, vector<1x32xf32>
    %17 = vector.broadcast %16 : vector<1x32xf32> to vector<8x32xf32>
    %18 = arith.addf %15, %17 : vector<8x32xf32>
    %cst_15 = arith.constant 0.000000e+00 : f32
    %19 = vector.broadcast %cst_15 : f32 to vector<8x32xf32>
    %20 = arith.maximumf %18, %19 : vector<8x32xf32>
    %c0_16 = arith.constant 0 : index
    %c0_17 = arith.constant 0 : index
    %21 = vector.load %arg8[%c0_16, %c0_17] : memref<32x1xf32, #tpu.memory_space<vmem>>, vector<32x1xf32>
    %cst_18 = arith.constant dense<0.000000e+00> : vector<8x1xf32>
    %22 = tpu.matmul %20, %21, %cst_18 {dimension_numbers = #tpu.dot_dimension_numbers<[1], [0], [0], [1], [0, 0, 1, 1], [], []>} : vector<8x32xf32>, vector<32x1xf32>, vector<8x1xf32> -> vector<8x1xf32>
    %c0_19 = arith.constant 0 : index
    %c0_20 = arith.constant 0 : index
    %23 = vector.load %arg9[%c0_19, %c0_20] : memref<1x1xf32, #tpu.memory_space<vmem>>, vector<1x1xf32>
    %24 = vector.broadcast %23 : vector<1x1xf32> to vector<8x1xf32>
    %25 = arith.addf %22, %24 : vector<8x1xf32>
    %c0_21 = arith.constant 0 : index
    %c0_22 = arith.constant 0 : index
    %26 = vector.load %arg10[%c0_21, %c0_22] : memref<8x1xf32, #tpu.memory_space<vmem>>, vector<8x1xf32>
    tpu.vector_store %arg10[%c0_21, %c0_22], %25 {strides = array<i32>} : memref<8x1xf32, #tpu.memory_space<vmem>>, vector<8x1xf32>,
    return
  }
  func.func @transform_0(%arg0: i32) -> (i32, i32) {
    %c0_i32 = arith.constant 0 : i32
    %c0_i32_0 = arith.constant 0 : i32
    return %arg0, %c0_i32 : i32, i32
  }
  func.func @transform_1(%arg0: i32) -> (i32, i32) {
    %c0_i32 = arith.constant 0 : i32
    %c0_i32_0 = arith.constant 0 : i32
    return %arg0, %c0_i32 : i32, i32
  }
  func.func @transform_2(%arg0: i32) -> (i32, i32) {
    %c0_i32 = arith.constant 0 : i32
    %c0_i32_0 = arith.constant 0 : i32
    %c0_i32_1 = arith.constant 0 : i32
    return %c0_i32, %c0_i32_0 : i32, i32
  }
  func.func @transform_3(%arg0: i32) -> (i32, i32) {
    %c0_i32 = arith.constant 0 : i32
    %c0_i32_0 = arith.constant 0 : i32
    %c0_i32_1 = arith.constant 0 : i32
    return %c0_i32, %c0_i32_0 : i32, i32
  }
  func.func @transform_4(%arg0: i32) -> (i32, i32) {
    %c0_i32 = arith.constant 0 : i32
    %c0_i32_0 = arith.constant 0 : i32
    %c0_i32_1 = arith.constant 0 : i32
    return %c0_i32, %c0_i32_0 : i32, i32
  }
  func.func @transform_5(%arg0: i32) -> (i32, i32) {
    %c0_i32 = arith.constant 0 : i32
    %c0_i32_0 = arith.constant 0 : i32
    %c0_i32_1 = arith.constant 0 : i32
    return %c0_i32, %c0_i32_0 : i32, i32
  }
  func.func @transform_6(%arg0: i32) -> (i32, i32) {
    %c0_i32 = arith.constant 0 : i32
    %c0_i32_0 = arith.constant 0 : i32
    %c0_i32_1 = arith.constant 0 : i32
    return %c0_i32, %c0_i32_0 : i32, i32
  }
  func.func @transform_7(%arg0: i32) -> (i32, i32) {
    %c0_i32 = arith.constant 0 : i32
    %c0_i32_0 = arith.constant 0 : i32
    %c0_i32_1 = arith.constant 0 : i32
    return %c0_i32, %c0_i32_0 : i32, i32
  }
  func.func @transform_8(%arg0: i32) -> (i32, i32) {
    %c0_i32 = arith.constant 0 : i32
    %c0_i32_0 = arith.constant 0 : i32
    %c0_i32_1 = arith.constant 0 : i32
    return %c0_i32, %c0_i32_0 : i32, i32
  }
  func.func @transform_9(%arg0: i32) -> (i32, i32) {
    %c0_i32 = arith.constant 0 : i32
    %c0_i32_0 = arith.constant 0 : i32
    return %arg0, %c0_i32 : i32, i32
  }
}

</mosaic_0001>

<llo_original>
// kernel: tpu_custom_call.1
$region0: #{tpu_custom_call.1}
  #allocation0 [shape = 'u32[]', space=smem, size = 0x4, offset = 0x4, fixed_abs, tag = 'smem constant byte address 0x4 - core index']
  #allocation1 [shape = 'u32[144,128]{1,0:T(1,128)}', space=vmem, size = 0x12000, scoped, tag = 'internal scratch']
  #allocation2 [shape = 'f32[1,1]{1,0:T(1,128)S(1)}', space=vmem, size = 0x200, scoped, tag = 'scoped memory for tpu_custom_call.1']
  %s0 = inlined_call_operand.hbm [shape: f32[8,16], index: 0, kind: input, shape index: {}]
  %s1 = inlined_call_operand.vmem [shape: f32[8,1], index: 1, kind: input, shape index: {}]
  %s2 = inlined_call_operand.vmem [shape: f32[16,32], index: 2, kind: input, shape index: {}]
  %s3 = inlined_call_operand.vmem [shape: f32[1,32], index: 3, kind: input, shape index: {}]
  %s4 = inlined_call_operand.vmem [shape: f32[1,32], index: 4, kind: input, shape index: {}]
  %s5 = inlined_call_operand.vmem [shape: f32[32,32], index: 5, kind: input, shape index: {}]
  %s6 = inlined_call_operand.vmem [shape: f32[1,32], index: 6, kind: input, shape index: {}]
  %s7 = inlined_call_operand.vmem [shape: f32[32,1], index: 7, kind: input, shape index: {}]
  %s8 = inlined_call_operand.<no memory space> [shape: f32[1,1], index: 8, kind: input, shape index: {}]
  %s9 = inlined_call_operand.vmem [shape: f32[8,1], index: 9, kind: output, shape index: {}]
  %s10 = sld [smem:[#allocation0]]
  $region50: #{tpu_custom_call.1} parent=0
    _
  %s12 = ssub.s32 1, %s10
  %s13 = scalar_select 0, %s12, %s10
  %v14 = vstv %s8
  %15 = vst [vmem:[#allocation2] sm:$0x1] %v14
  $region1: #{tpu_custom_call.1} parent=0
    #allocation3 [shape = 'u8[4096]{0}', space=vmem, size = 0x1000, scoped, tag = 'input window, operand 0, single buffered']
    #allocation4 [shape = 's32[1]{0}', space=sflag, size = 0x4, scoped, tag = 'scoped memory for tpu_custom_call.1']
    %16 = vsyncpa [#allocation4], 0
    // Predicated region
    $region2: #{tpu_custom_call.1} parent=1 // pred_check
      _
    $region3: #{tpu_custom_call.1} parent=1 // pred_check_branch
      %18 = sbr.rel (0) target = $region5
    $region4: #{tpu_custom_call.1} parent=1 // pred_region
      %s20 = ssub.s32 128, 128
      %21 = vsyncadd [#allocation4], %s20
      %s23 = sshll.u32 [#allocation3], 4
      %s24 = int_to_ptr.vmem [resolvable:$true] %s23
      %26 = dma.hbm_to_vmem [thread:$0]  %s0, 128, %s24, [#allocation4]
    $region5: #{tpu_custom_call.1} parent=1 // pred_fallthru
      _
    // Predicated region
    $region6: #{tpu_custom_call.1} parent=1 // pred_check
      _
    $region7: #{tpu_custom_call.1} parent=1 // pred_check_branch
      %28 = sbr.rel (0) target = $region9
    $region8: #{tpu_custom_call.1} parent=1 // pred_region
      _
    $region9: #{tpu_custom_call.1} parent=1 // pred_fallthru
      _
    // Predicated region
    $region10: #{tpu_custom_call.1} parent=1 // pred_check
      _
    $region11: #{tpu_custom_call.1} parent=1 // pred_check_branch
      %30 = sbr.rel (0) target = $region13
    $region12: #{tpu_custom_call.1} parent=1 // pred_region
      _
    $region13: #{tpu_custom_call.1} parent=1 // pred_fallthru
      _
    // Predicated region
    $region14: #{tpu_custom_call.1} parent=1 // pred_check
      _
    $region15: #{tpu_custom_call.1} parent=1 // pred_check_branch
      %32 = sbr.rel (0) target = $region17
    $region16: #{tpu_custom_call.1} parent=1 // pred_region
      _
    $region17: #{tpu_custom_call.1} parent=1 // pred_fallthru
      _
    // Predicated region
    $region18: #{tpu_custom_call.1} parent=1 // pred_check
      _
    $region19: #{tpu_custom_call.1} parent=1 // pred_check_branch
      %34 = sbr.rel (0) target = $region21
    $region20: #{tpu_custom_call.1} parent=1 // pred_region
      _
    $region21: #{tpu_custom_call.1} parent=1 // pred_fallthru
      _
    // Predicated region
    $region22: #{tpu_custom_call.1} parent=1 // pred_check
      _
    $region23: #{tpu_custom_call.1} parent=1 // pred_check_branch
      %36 = sbr.rel (0) target = $region25
    $region24: #{tpu_custom_call.1} parent=1 // pred_region
      _
    $region25: #{tpu_custom_call.1} parent=1 // pred_fallthru
      _
    // Predicated region
    $region26: #{tpu_custom_call.1} parent=1 // pred_check
      _
    $region27: #{tpu_custom_call.1} parent=1 // pred_check_branch
      %38 = sbr.rel (0) target = $region29
    $region28: #{tpu_custom_call.1} parent=1 // pred_region
      _
    $region29: #{tpu_custom_call.1} parent=1 // pred_fallthru
      _
    // Predicated region
    $region30: #{tpu_custom_call.1} parent=1 // pred_check
      _
    $region31: #{tpu_custom_call.1} parent=1 // pred_check_branch
      %40 = sbr.rel (0) target = $region33
    $region32: #{tpu_custom_call.1} parent=1 // pred_region
      _
    $region33: #{tpu_custom_call.1} parent=1 // pred_fallthru
      _
    // Predicated region
    $region34: #{tpu_custom_call.1} parent=1 // pred_check
      _
    $region35: #{tpu_custom_call.1} parent=1 // pred_check_branch
      %42 = sbr.rel (0) target = $region37
    $region36: #{tpu_custom_call.1} parent=1 // pred_region
      _
    $region37: #{tpu_custom_call.1} parent=1 // pred_fallthru
      _
    // Predicated region
    $region38: #{tpu_custom_call.1} parent=1 // pred_check
      _
    $region39: #{tpu_custom_call.1} parent=1 // pred_check_branch
      %44 = sbr.rel (0) target = $region41
    $region40: #{tpu_custom_call.1} parent=1 // pred_region
      %45 = dma.done [#allocation4], 128
    $region41: #{tpu_custom_call.1} parent=1 // pred_fallthru
      _
    %v46 = vld [vmem:[#allocation3] sm:$0xff]
    %v47 = vld [vmem:[%s1] sm:$0xff]
    %v48 = vld [vmem:[%s2] sm:$0xff]
    %v49 = vld [vmem:[%s2 + $0x8] sm:$0xff]
    %v50 = vld [vmem:[%s3] sm:$0x1]
    %52 = vset.pattern.permute.xlu0 0
    %53 = vperm.xlu0 %52, %v47
    %v54 = vpop.permute.xlu0 %53
    %v57 = vlaneseq
    %v58 = vshrl.u32 %v57, 7
    %v59 = vsub.s32 0, %v58
    %v60 = vrot.slane %v50, %v59
    %v62 = vmul.f32 %v54, %v60
    %vm63 = vcmask 130048
    %v65 = vsel %vm63, %v46, 0
    %67 = vmatprep.subr.mxu0 0.0
    %68 = vmatpush1.msra.mxu0 0.0
    %69 = vmatprep.subr.mxu0 0.0
    %70 = vmatpush1.msra.mxu0 0.0
    %71 = vmatprep.subr.mxu0 0.0
    %72 = vmatpush1.msra.mxu0 0.0
    %73 = vmatprep.subr.mxu0 0.0
    %74 = vmatpush1.msra.mxu0 0.0
    %75 = vmatprep.subr.mxu0 0.0
    %76 = vmatpush1.msra.mxu0 0.0
    %77 = vmatprep.subr.mxu0 0.0
    %78 = vmatpush1.msra.mxu0 0.0
    %79 = vmatprep.subr.mxu0 0.0
    %80 = vmatpush1.msra.mxu0 0.0
    %81 = vmatprep.subr.mxu0 0.0
    %82 = vmatpush1.msra.mxu0 0.0
    %83 = vmatprep.subr.mxu0 0.0
    %84 = vmatpush1.msra.mxu0 0.0
    %85 = vmatprep.subr.mxu0 0.0
    %86 = vmatpush1.msra.mxu0 0.0
    %87 = vmatprep.subr.mxu0 0.0
    %88 = vmatpush1.msra.mxu0 0.0
    %89 = vmatprep.subr.mxu0 0.0
    %90 = vmatpush1.msra.mxu0 0.0
    %91 = vmatprep.subr.mxu0 0.0
    %92 = vmatpush1.msra.mxu0 0.0
    %93 = vmatprep.subr.mxu0 0.0
    %94 = vmatpush1.msra.mxu0 0.0
    %95 = vmatprep.subr.mxu0 0.0
    %96 = vmatpush1.msra.mxu0 %v49
    %97 = vmatprep.subr.mxu0 0.0
    %98 = vmatpush1.msra.mxu0 %v48
    %99 = vmatprep.subr.mxu0 0.0
    %100 = vmatpush2.msra.mxu0 0.0
    %101 = vmatprep.subr.mxu0 0.0
    %102 = vmatpush2.msra.mxu0 0.0
    %103 = vmatprep.subr.mxu0 0.0
    %104 = vmatpush2.msra.mxu0 0.0
    %105 = vmatprep.subr.mxu0 0.0
    %106 = vmatpush2.msra.mxu0 0.0
    %107 = vmatprep.subr.mxu0 0.0
    %108 = vmatpush2.msra.mxu0 0.0
    %109 = vmatprep.subr.mxu0 0.0
    %110 = vmatpush2.msra.mxu0 0.0
    %111 = vmatprep.subr.mxu0 0.0
    %112 = vmatpush2.msra.mxu0 0.0
    %113 = vmatprep.subr.mxu0 0.0
    %114 = vmatpush2.msra.mxu0 0.0
    %115 = vmatprep.subr.mxu0 0.0
    %116 = vmatpush2.msra.mxu0 0.0
    %117 = vmatprep.subr.mxu0 0.0
    %118 = vmatpush2.msra.mxu0 0.0
    %119 = vmatprep.subr.mxu0 0.0
    %120 = vmatpush2.msra.mxu0 0.0
    %121 = vmatprep.subr.mxu0 0.0
    %122 = vmatpush2.msra.mxu0 0.0
    %123 = vmatprep.subr.mxu0 0.0
    %124 = vmatpush2.msra.mxu0 0.0
    %125 = vmatprep.subr.mxu0 0.0
    %126 = vmatpush2.msra.mxu0 0.0
    %127 = vmatprep.subr.mxu0 0.0
    %128 = vmatpush2.msra.mxu0 0.0
    %129 = vmatprep.subr.mxu0 0.0
    %130 = vmatpush2.msra.mxu0 0.0
    %131 = vmatprep.mubr.f32.mxu0 0.0
    %132 = vmatmul.mubr.f32.gmra.mxu0 %v65
    %v133 = vpop.f32.mrf.mxu0
    %v134 = vadd.f32 %v62, %v133
    %v135 = vpop.f32.mrf.mxu0
    %136 = vdwg.mxu0
    %v137 = vld [vmem:[%s4] sm:$0x1]
    %v139 = vlaneseq
    %v140 = vshrl.u32 %v139, 7
    %v141 = vsub.s32 0, %v140
    %v142 = vrot.slane %v137, %v141
    %v144 = vadd.f32 %v134, %v142
    %v145 = vmax.f32 %v144, 0.0
    %v146 = vld [vmem:[%s5] sm:$0xff]
    %v147 = vld [vmem:[%s5 + $0x8] sm:$0xff]
    %v148 = vld [vmem:[%s5 + $0x10] sm:$0xff]
    %v149 = vld [vmem:[%s5 + $0x18] sm:$0xff]
    %v150 = vld [vmem:[%s6] sm:$0x1]
    %v152 = vlaneseq
    %v153 = vshrl.u32 %v152, 7
    %v154 = vsub.s32 0, %v153
    %v155 = vrot.slane %v150, %v154
    %vm157 = vcmask 261120
    %v159 = vsel %vm157, %v145, 0
    %161 = vmatprep.subr.mxu0 0.0
    %162 = vmatpush1.msra.mxu0 0.0
    %163 = vmatprep.subr.mxu0 0.0
    %164 = vmatpush1.msra.mxu0 0.0
    %165 = vmatprep.subr.mxu0 0.0
    %166 = vmatpush1.msra.mxu0 0.0
    %167 = vmatprep.subr.mxu0 0.0
    %168 = vmatpush1.msra.mxu0 0.0
    %169 = vmatprep.subr.mxu0 0.0
    %170 = vmatpush1.msra.mxu0 0.0
    %171 = vmatprep.subr.mxu0 0.0
    %172 = vmatpush1.msra.mxu0 0.0
    %173 = vmatprep.subr.mxu0 0.0
    %174 = vmatpush1.msra.mxu0 0.0
    %175 = vmatprep.subr.mxu0 0.0
    %176 = vmatpush1.msra.mxu0 0.0
    %177 = vmatprep.subr.mxu0 0.0
    %178 = vmatpush1.msra.mxu0 0.0
    %179 = vmatprep.subr.mxu0 0.0
    %180 = vmatpush1.msra.mxu0 0.0
    %181 = vmatprep.subr.mxu0 0.0
    %182 = vmatpush1.msra.mxu0 0.0
    %183 = vmatprep.subr.mxu0 0.0
    %184 = vmatpush1.msra.mxu0 0.0
    %185 = vmatprep.subr.mxu0 0.0
    %186 = vmatpush1.msra.mxu0 %v149
    %187 = vmatprep.subr.mxu0 0.0
    %188 = vmatpush1.msra.mxu0 %v148
    %189 = vmatprep.subr.mxu0 0.0
    %190 = vmatpush1.msra.mxu0 %v147
    %191 = vmatprep.subr.mxu0 0.0
    %192 = vmatpush1.msra.mxu0 %v146
    %193 = vmatprep.subr.mxu0 0.0
    %194 = vmatpush2.msra.mxu0 0.0
    %195 = vmatprep.subr.mxu0 0.0
    %196 = vmatpush2.msra.mxu0 0.0
    %197 = vmatprep.subr.mxu0 0.0
    %198 = vmatpush2.msra.mxu0 0.0
    %199 = vmatprep.subr.mxu0 0.0
    %200 = vmatpush2.msra.mxu0 0.0
    %201 = vmatprep.subr.mxu0 0.0
    %202 = vmatpush2.msra.mxu0 0.0
    %203 = vmatprep.subr.mxu0 0.0
    %204 = vmatpush2.msra.mxu0 0.0
    %205 = vmatprep.subr.mxu0 0.0
    %206 = vmatpush2.msra.mxu0 0.0
    %207 = vmatprep.subr.mxu0 0.0
    %208 = vmatpush2.msra.mxu0 0.0
    %209 = vmatprep.subr.mxu0 0.0
    %210 = vmatpush2.msra.mxu0 0.0
    %211 = vmatprep.subr.mxu0 0.0
    %212 = vmatpush2.msra.mxu0 0.0
    %213 = vmatprep.subr.mxu0 0.0
    %214 = vmatpush2.msra.mxu0 0.0
    %215 = vmatprep.subr.mxu0 0.0
    %216 = vmatpush2.msra.mxu0 0.0
    %217 = vmatprep.subr.mxu0 0.0
    %218 = vmatpush2.msra.mxu0 0.0
    %219 = vmatprep.subr.mxu0 0.0
    %220 = vmatpush2.msra.mxu0 0.0
    %221 = vmatprep.subr.mxu0 0.0
    %222 = vmatpush2.msra.mxu0 0.0
    %223 = vmatprep.subr.mxu0 0.0
    %224 = vmatpush2.msra.mxu0 0.0
    %225 = vmatprep.mubr.f32.mxu0 0.0
    %226 = vmatmul.mubr.f32.gmra.mxu0 %v159
    %v227 = vpop.f32.mrf.mxu0
    %v228 = vadd.f32 %v155, %v227
    %v229 = vpop.f32.mrf.mxu0
    %230 = vdwg.mxu0
    %v231 = vmax.f32 %v228, 0.0
    %v232 = vld [vmem:[%s7] sm:$0xff]
    %v233 = vld [vmem:[%s7 + $0x8] sm:$0xff]
    %v234 = vld [vmem:[%s7 + $0x10] sm:$0xff]
    %v235 = vld [vmem:[%s7 + $0x18] sm:$0xff]
    %v236 = vld [vmem:[#allocation2] sm:$0x1]
    %v238 = vlaneseq
    %v239 = vshrl.u32 %v238, 7
    %v240 = vsub.s32 0, %v239
    %v241 = vrot.slane %v236, %v240
    %v244 = vsel %vm157, %v231, 0
    %246 = vmatprep.subr.mxu0 0.0
    %247 = vmatpush1.msra.mxu0 0.0
    %248 = vmatprep.subr.mxu0 0.0
    %249 = vmatpush1.msra.mxu0 0.0
    %250 = vmatprep.subr.mxu0 0.0
    %251 = vmatpush1.msra.mxu0 0.0
    %252 = vmatprep.subr.mxu0 0.0
    %253 = vmatpush1.msra.mxu0 0.0
    %254 = vmatprep.subr.mxu0 0.0
    %255 = vmatpush1.msra.mxu0 0.0
    %256 = vmatprep.subr.mxu0 0.0
    %257 = vmatpush1.msra.mxu0 0.0
    %258 = vmatprep.subr.mxu0 0.0
    %259 = vmatpush1.msra.mxu0 0.0
    %260 = vmatprep.subr.mxu0 0.0
    %261 = vmatpush1.msra.mxu0 0.0
    %262 = vmatprep.subr.mxu0 0.0
    %263 = vmatpush1.msra.mxu0 0.0
    %264 = vmatprep.subr.mxu0 0.0
    %265 = vmatpush1.msra.mxu0 0.0
    %266 = vmatprep.subr.mxu0 0.0
    %267 = vmatpush1.msra.mxu0 0.0
    %268 = vmatprep.subr.mxu0 0.0
    %269 = vmatpush1.msra.mxu0 0.0
    %270 = vmatprep.subr.mxu0 0.0
    %271 = vmatpush1.msra.mxu0 %v235
    %272 = vmatprep.subr.mxu0 0.0
    %273 = vmatpush1.msra.mxu0 %v234
    %274 = vmatprep.subr.mxu0 0.0
    %275 = vmatpush1.msra.mxu0 %v233
    %276 = vmatprep.subr.mxu0 0.0
    %277 = vmatpush1.msra.mxu0 %v232
    %278 = vmatprep.subr.mxu0 0.0
    %279 = vmatpush2.msra.mxu0 0.0
    %280 = vmatprep.subr.mxu0 0.0
    %281 = vmatpush2.msra.mxu0 0.0
    %282 = vmatprep.subr.mxu0 0.0
    %283 = vmatpush2.msra.mxu0 0.0
    %284 = vmatprep.subr.mxu0 0.0
    %285 = vmatpush2.msra.mxu0 0.0
    %286 = vmatprep.subr.mxu0 0.0
    %287 = vmatpush2.msra.mxu0 0.0
    %288 = vmatprep.subr.mxu0 0.0
    %289 = vmatpush2.msra.mxu0 0.0
    %290 = vmatprep.subr.mxu0 0.0
    %291 = vmatpush2.msra.mxu0 0.0
    %292 = vmatprep.subr.mxu0 0.0
    %293 = vmatpush2.msra.mxu0 0.0
    %294 = vmatprep.subr.mxu0 0.0
    %295 = vmatpush2.msra.mxu0 0.0
    %296 = vmatprep.subr.mxu0 0.0
    %297 = vmatpush2.msra.mxu0 0.0
    %298 = vmatprep.subr.mxu0 0.0
    %299 = vmatpush2.msra.mxu0 0.0
    %300 = vmatprep.subr.mxu0 0.0
    %301 = vmatpush2.msra.mxu0 0.0
    %302 = vmatprep.subr.mxu0 0.0
    %303 = vmatpush2.msra.mxu0 0.0
    %304 = vmatprep.subr.mxu0 0.0
    %305 = vmatpush2.msra.mxu0 0.0
    %306 = vmatprep.subr.mxu0 0.0
    %307 = vmatpush2.msra.mxu0 0.0
    %308 = vmatprep.subr.mxu0 0.0
    %309 = vmatpush2.msra.mxu0 0.0
    %310 = vmatprep.mubr.f32.mxu0 0.0
    %311 = vmatmul.mubr.f32.gmra.mxu0 %v244
    %v312 = vpop.f32.mrf.mxu0
    %v313 = vadd.f32 %v241, %v312
    %v314 = vpop.f32.mrf.mxu0
    %315 = vdwg.mxu0
    %vm316 = vcmask 7168
    %317 = vst.msk [vmem:[%s9] sm:$0xff] %vm316, %v313
    // Predicated region
    $region42: #{tpu_custom_call.1} parent=1 // pred_check
      _
    $region43: #{tpu_custom_call.1} parent=1 // pred_check_branch
      %319 = sbr.rel (0) target = $region45
    $region44: #{tpu_custom_call.1} parent=1 // pred_region
      _
    $region45: #{tpu_custom_call.1} parent=1 // pred_fallthru
      _
    // Predicated region
    $region46: #{tpu_custom_call.1} parent=1 // pred_check
      _
    $region47: #{tpu_custom_call.1} parent=1 // pred_check_branch
      %321 = sbr.rel (0) target = $region49
    $region48: #{tpu_custom_call.1} parent=1 // pred_region
      _
    $region49: #{tpu_custom_call.1} parent=1 // pred_fallthru
      _
    %322 = vsyncpa [#allocation4], 1

</llo_original>
